<compile_context>
chip_gen: v5e
topology: v5e:2x2
jax: 0.10.0
libtpu: 0.0.40
codegen_flags: <defaults>
</compile_context>

<pallas_src>
import jax
import jax.numpy as jnp
from jax.experimental import pallas as pl
from jax.experimental.pallas import tpu as pltpu

_EPS = 1e-5  # PyTorch BatchNorm1d default eps


def _bn_relu(h, gamma, beta):
    # BatchNorm1d (training mode, biased variance) + ReLU, single reduction
    # pass with the affine folded into one scale/shift FMA.
    n = h.shape[0]
    inv_n = 1.0 / n
    mean = jnp.sum(h, axis=0, keepdims=True) * inv_n
    ex2 = jnp.sum(h * h, axis=0, keepdims=True) * inv_n
    var = ex2 - mean * mean
    scale = gamma * jax.lax.rsqrt(var + _EPS)
    shift = beta - mean * scale
    return jnp.maximum(h * scale + shift, 0.0)


def _bn_relu_per_half(h, gamma, beta, nb):
    # h is the stacked (2B, C) activation; BN stats must be computed per
    # signal (rows [:nb] came from x1, rows [nb:] from x2) to match two
    # independent PyTorch forward passes.
    return jnp.concatenate(
        [_bn_relu(h[:nb], gamma, beta), _bn_relu(h[nb:], gamma, beta)], axis=0)


def surrogate_kernel(x1_ref, x2_ref,
                     w12_ref, b12_ref, g1_ref, be1_ref,
                     w3_ref, b3_ref, g2_ref, be2_ref,
                     wf1_ref, bf1_ref, wot_ref, bo_ref,
                     out_ref):
    nb = x1_ref.shape[0]

    # Stack both signals so the shared feature tower runs once: (2B, horizon).
    x = jnp.concatenate([x1_ref[...], x2_ref[...]], axis=0)

    # Fused conv1+conv2 (k=1 Conv1d's == matmuls): (2B, 64)
    h = jnp.dot(x, w12_ref[...], preferred_element_type=jnp.float32) + b12_ref[...]
    h = _bn_relu_per_half(h, g1_ref[...], be1_ref[...], nb)          # BN(64) + ReLU
    # conv3: (2B, 32)
    h = jnp.dot(h, w3_ref[...], preferred_element_type=jnp.float32) + b3_ref[...]
    h = _bn_relu_per_half(h, g2_ref[...], be2_ref[...], nb)          # BN(32) + ReLU
    # fc1: (2B, 16)
    h = jnp.dot(h, wf1_ref[...], preferred_element_type=jnp.float32) + bf1_ref[...]
    f = jax.nn.sigmoid(h)                                            # Sigmoid

    # torch.abs(x1_feat - x2_feat): (B, 16)
    d = jnp.abs(f[:nb] - f[nb:])

    # fcOut + torch.sum on the VPU/XLU (no MXU, no width-1 masked store):
    #   sum_i (d_i @ wo + bo) == (sum_i d_i) . wo + B * bo
    colsum = jnp.sum(d, axis=0, keepdims=True)                       # (1, 16)
    y = jnp.sum(colsum * wot_ref[...], axis=1, keepdims=True)        # (1, 1)
    out_ref[...] = y + nb * bo_ref[...]


def surrogate_forward(x1, x2, params):
    """x1, x2: (B, horizon, 1) float32 (NCL, as in the PyTorch module)."""
    (w1, b1, w2, b2, g1, be1, w3, b3, g2, be2, wf1, bf1, wo, bo) = params
    B, horizon = x1.shape[0], x1.shape[1]

    # L == 1, so squeezing the trailing dim is a free metadata reshape.
    a = jnp.reshape(x1, (B, horizon)).astype(jnp.float32)
    b = jnp.reshape(x2, (B, horizon)).astype(jnp.float32)

    # Host-side algebraic fusion of the first two (linear, no nonlinearity
    # between) layers, and pre-transpose of the output head.
    w12 = jnp.dot(w1, w2, preferred_element_type=jnp.float32)        # (horizon, 64)
    b12 = jnp.dot(b1, w2, preferred_element_type=jnp.float32) + b2   # (1, 64)
    wot = wo.T                                                       # (1, 16)

    args = (a, b, w12, b12, g1, be1, w3, b3, g2, be2, wf1, bf1, wot, bo)
    vmem = pl.BlockSpec(memory_space=pltpu.MemorySpace.VMEM)
    out = pl.pallas_call(
        surrogate_kernel,
        out_shape=jax.ShapeDtypeStruct((1, 1), jnp.float32),
        in_specs=[vmem] * len(args),
        out_specs=vmem,
    )(*args)
    return out[0, 0]


def init_params(key, horizon, hidden_dim):
    """Deterministic PyTorch-style init (uniform(-1/sqrt(fan_in), 1/sqrt(fan_in)));
    BN gamma=1, beta=0.  Conv/Linear weights are stored pre-transposed as (in, out)."""
    ks = jax.random.split(key, 10)

    def u(k, shape, fan_in):
        bound = 1.0 / (fan_in ** 0.5)
        return jax.random.uniform(k, shape, jnp.float32, -bound, bound)

    w1 = u(ks[0], (horizon, hidden_dim), horizon)
    b1 = u(ks[1], (1, hidden_dim), horizon)
    w2 = u(ks[2], (hidden_dim, 64), hidden_dim)
    b2 = u(ks[3], (1, 64), hidden_dim)
    g1 = jnp.ones((1, 64), jnp.float32)
    be1 = jnp.zeros((1, 64), jnp.float32)
    w3 = u(ks[4], (64, 32), 64)
    b3 = u(ks[5], (1, 32), 64)
    g2 = jnp.ones((1, 32), jnp.float32)
    be2 = jnp.zeros((1, 32), jnp.float32)
    wf1 = u(ks[6], (32, 16), 32)
    bf1 = u(ks[7], (1, 16), 32)
    wo = u(ks[8], (16, 1), 16)
    bo = u(ks[9], (1, 1), 16)
    return (w1, b1, w2, b2, g1, be1, w3, b3, g2, be2, wf1, bf1, wo, bo)


if __name__ == "__main__":
    # config.horizon = 8 (input channels), config.batch_size = 16 (hidden_dim)
    B, HORIZON, HIDDEN = 4, 8, 16
    key = jax.random.PRNGKey(0)
    kx1, kx2, kp = jax.random.split(key, 3)

    x1 = jax.random.normal(kx1, (B, HORIZON, 1), jnp.float32)  # signal 1 (targets), NCL
    x2 = jax.random.normal(kx2, (B, HORIZON, 1), jnp.float32)  # signal 2 (predictions), NCL
    params = init_params(kp, HORIZON, HIDDEN)

    score = surrogate_forward(x1, x2, params)
    jax.block_until_ready(score)
    print("KERNEL_OK")
</pallas_src>

<mosaic_0001>
module attributes {stable_mosaic.version = 11 : i64} {
  func.func @surrogate_kernel(%arg0: memref<4x8xf32, #tpu.memory_space<vmem>>, %arg1: memref<4x8xf32, #tpu.memory_space<vmem>>, %arg2: memref<8x64xf32, #tpu.memory_space<vmem>>, %arg3: memref<1x64xf32, #tpu.memory_space<vmem>>, %arg4: memref<1x64xf32, #tpu.memory_space<vmem>>, %arg5: memref<1x64xf32, #tpu.memory_space<vmem>>, %arg6: memref<64x32xf32, #tpu.memory_space<vmem>>, %arg7: memref<1x32xf32, #tpu.memory_space<vmem>>, %arg8: memref<1x32xf32, #tpu.memory_space<vmem>>, %arg9: memref<1x32xf32, #tpu.memory_space<vmem>>, %arg10: memref<32x16xf32, #tpu.memory_space<vmem>>, %arg11: memref<1x16xf32, #tpu.memory_space<vmem>>, %arg12: memref<1x16xf32, #tpu.memory_space<vmem>>, %arg13: memref<1x1xf32, #tpu.memory_space<vmem>>, %arg14: memref<1x1xf32, #tpu.memory_space<vmem>>) attributes {dimension_semantics = [], scalar_prefetch = 0 : i64, scratch_operands = 0 : i64, tpu.core_type = #tpu.core_type<tc>} {
    %c0 = arith.constant 0 : index
    %c0_0 = arith.constant 0 : index
    %0 = vector.load %arg0[%c0, %c0_0] : memref<4x8xf32, #tpu.memory_space<vmem>>, vector<4x8xf32>
    %c0_1 = arith.constant 0 : index
    %c0_2 = arith.constant 0 : index
    %1 = vector.load %arg1[%c0_1, %c0_2] : memref<4x8xf32, #tpu.memory_space<vmem>>, vector<4x8xf32>
    %2 = tpu.concatenate %0, %1 in 0 : vector<4x8xf32>, vector<4x8xf32> -> vector<8x8xf32>
    %c0_3 = arith.constant 0 : index
    %c0_4 = arith.constant 0 : index
    %3 = vector.load %arg2[%c0_3, %c0_4] : memref<8x64xf32, #tpu.memory_space<vmem>>, vector<8x64xf32>
    %cst = arith.constant dense<0.000000e+00> : vector<8x64xf32>
    %4 = tpu.matmul %2, %3, %cst {dimension_numbers = #tpu.dot_dimension_numbers<[1], [0], [0], [1], [0, 0, 1, 1], [], []>} : vector<8x8xf32>, vector<8x64xf32>, vector<8x64xf32> -> vector<8x64xf32>
    %c0_5 = arith.constant 0 : index
    %c0_6 = arith.constant 0 : index
    %5 = vector.load %arg3[%c0_5, %c0_6] : memref<1x64xf32, #tpu.memory_space<vmem>>, vector<1x64xf32>
    %6 = vector.broadcast %5 : vector<1x64xf32> to vector<8x64xf32>
    %7 = arith.addf %4, %6 : vector<8x64xf32>
    %c0_7 = arith.constant 0 : index
    %c0_8 = arith.constant 0 : index
    %8 = vector.load %arg4[%c0_7, %c0_8] : memref<1x64xf32, #tpu.memory_space<vmem>>, vector<1x64xf32>
    %c0_9 = arith.constant 0 : index
    %c0_10 = arith.constant 0 : index
    %9 = vector.load %arg5[%c0_9, %c0_10] : memref<1x64xf32, #tpu.memory_space<vmem>>, vector<1x64xf32>
    %10 = vector.extract_strided_slice %7 {offsets = [0, 0], sizes = [4, 64], strides = [1, 1]} : vector<8x64xf32> to vector<4x64xf32>
    %cst_11 = arith.constant dense<0.000000e+00> : vector<64xf32>
    %11 = vector.multi_reduction <add>, %10, %cst_11 [0] : vector<4x64xf32> to vector<64xf32>
    %12 = vector.shape_cast %11 : vector<64xf32> to vector<1x64xf32>
    %cst_12 = arith.constant 2.500000e-01 : f32
    %13 = vector.broadcast %cst_12 : f32 to vector<1x64xf32>
    %14 = arith.mulf %12, %13 : vector<1x64xf32>
    %15 = arith.mulf %10, %10 : vector<4x64xf32>
    %cst_13 = arith.constant dense<0.000000e+00> : vector<64xf32>
    %16 = vector.multi_reduction <add>, %15, %cst_13 [0] : vector<4x64xf32> to vector<64xf32>
    %17 = vector.shape_cast %16 : vector<64xf32> to vector<1x64xf32>
    %cst_14 = arith.constant 2.500000e-01 : f32
    %18 = vector.broadcast %cst_14 : f32 to vector<1x64xf32>
    %19 = arith.mulf %17, %18 : vector<1x64xf32>
    %20 = arith.mulf %14, %14 : vector<1x64xf32>
    %21 = arith.subf %19, %20 : vector<1x64xf32>
    %cst_15 = arith.constant 9.99999974E-6 : f32
    %22 = vector.broadcast %cst_15 : f32 to vector<1x64xf32>
    %23 = arith.addf %21, %22 : vector<1x64xf32>
    %24 = math.rsqrt %23 : vector<1x64xf32>
    %25 = arith.mulf %8, %24 : vector<1x64xf32>
    %26 = arith.mulf %14, %25 : vector<1x64xf32>
    %27 = arith.subf %9, %26 : vector<1x64xf32>
    %28 = vector.broadcast %25 : vector<1x64xf32> to vector<4x64xf32>
    %29 = arith.mulf %10, %28 : vector<4x64xf32>
    %30 = vector.broadcast %27 : vector<1x64xf32> to vector<4x64xf32>
    %31 = arith.addf %29, %30 : vector<4x64xf32>
    %cst_16 = arith.constant 0.000000e+00 : f32
    %32 = vector.broadcast %cst_16 : f32 to vector<4x64xf32>
    %33 = arith.maximumf %31, %32 : vector<4x64xf32>
    %34 = vector.extract_strided_slice %7 {offsets = [4, 0], sizes = [4, 64], strides = [1, 1]} : vector<8x64xf32> to vector<4x64xf32>
    %cst_17 = arith.constant dense<0.000000e+00> : vector<64xf32>
    %35 = vector.multi_reduction <add>, %34, %cst_17 [0] : vector<4x64xf32> to vector<64xf32>
    %36 = vector.shape_cast %35 : vector<64xf32> to vector<1x64xf32>
    %cst_18 = arith.constant 2.500000e-01 : f32
    %37 = vector.broadcast %cst_18 : f32 to vector<1x64xf32>
    %38 = arith.mulf %36, %37 : vector<1x64xf32>
    %39 = arith.mulf %34, %34 : vector<4x64xf32>
    %cst_19 = arith.constant dense<0.000000e+00> : vector<64xf32>
    %40 = vector.multi_reduction <add>, %39, %cst_19 [0] : vector<4x64xf32> to vector<64xf32>
    %41 = vector.shape_cast %40 : vector<64xf32> to vector<1x64xf32>
    %cst_20 = arith.constant 2.500000e-01 : f32
    %42 = vector.broadcast %cst_20 : f32 to vector<1x64xf32>
    %43 = arith.mulf %41, %42 : vector<1x64xf32>
    %44 = arith.mulf %38, %38 : vector<1x64xf32>
    %45 = arith.subf %43, %44 : vector<1x64xf32>
    %cst_21 = arith.constant 9.99999974E-6 : f32
    %46 = vector.broadcast %cst_21 : f32 to vector<1x64xf32>
    %47 = arith.addf %45, %46 : vector<1x64xf32>
    %48 = math.rsqrt %47 : vector<1x64xf32>
    %49 = arith.mulf %8, %48 : vector<1x64xf32>
    %50 = arith.mulf %38, %49 : vector<1x64xf32>
    %51 = arith.subf %9, %50 : vector<1x64xf32>
    %52 = vector.broadcast %49 : vector<1x64xf32> to vector<4x64xf32>
    %53 = arith.mulf %34, %52 : vector<4x64xf32>
    %54 = vector.broadcast %51 : vector<1x64xf32> to vector<4x64xf32>
    %55 = arith.addf %53, %54 : vector<4x64xf32>
    %cst_22 = arith.constant 0.000000e+00 : f32
    %56 = vector.broadcast %cst_22 : f32 to vector<4x64xf32>
    %57 = arith.maximumf %55, %56 : vector<4x64xf32>
    %58 = tpu.concatenate %33, %57 in 0 : vector<4x64xf32>, vector<4x64xf32> -> vector<8x64xf32>
    %c0_23 = arith.constant 0 : index
    %c0_24 = arith.constant 0 : index
    %59 = vector.load %arg6[%c0_23, %c0_24] : memref<64x32xf32, #tpu.memory_space<vmem>>, vector<64x32xf32>
    %cst_25 = arith.constant dense<0.000000e+00> : vector<8x32xf32>
    %60 = tpu.matmul %58, %59, %cst_25 {dimension_numbers = #tpu.dot_dimension_numbers<[1], [0], [0], [1], [0, 0, 1, 1], [], []>} : vector<8x64xf32>, vector<64x32xf32>, vector<8x32xf32> -> vector<8x32xf32>
    %c0_26 = arith.constant 0 : index
    %c0_27 = arith.constant 0 : index
    %61 = vector.load %arg7[%c0_26, %c0_27] : memref<1x32xf32, #tpu.memory_space<vmem>>, vector<1x32xf32>
    %62 = vector.broadcast %61 : vector<1x32xf32> to vector<8x32xf32>
    %63 = arith.addf %60, %62 : vector<8x32xf32>
    %c0_28 = arith.constant 0 : index
    %c0_29 = arith.constant 0 : index
    %64 = vector.load %arg8[%c0_28, %c0_29] : memref<1x32xf32, #tpu.memory_space<vmem>>, vector<1x32xf32>
    %c0_30 = arith.constant 0 : index
    %c0_31 = arith.constant 0 : index
    %65 = vector.load %arg9[%c0_30, %c0_31] : memref<1x32xf32, #tpu.memory_space<vmem>>, vector<1x32xf32>
    %66 = vector.extract_strided_slice %63 {offsets = [0, 0], sizes = [4, 32], strides = [1, 1]} : vector<8x32xf32> to vector<4x32xf32>
    %cst_32 = arith.constant dense<0.000000e+00> : vector<32xf32>
    %67 = vector.multi_reduction <add>, %66, %cst_32 [0] : vector<4x32xf32> to vector<32xf32>
    %68 = vector.shape_cast %67 : vector<32xf32> to vector<1x32xf32>
    %cst_33 = arith.constant 2.500000e-01 : f32
    %69 = vector.broadcast %cst_33 : f32 to vector<1x32xf32>
    %70 = arith.mulf %68, %69 : vector<1x32xf32>
    %71 = arith.mulf %66, %66 : vector<4x32xf32>
    %cst_34 = arith.constant dense<0.000000e+00> : vector<32xf32>
    %72 = vector.multi_reduction <add>, %71, %cst_34 [0] : vector<4x32xf32> to vector<32xf32>
    %73 = vector.shape_cast %72 : vector<32xf32> to vector<1x32xf32>
    %cst_35 = arith.constant 2.500000e-01 : f32
    %74 = vector.broadcast %cst_35 : f32 to vector<1x32xf32>
    %75 = arith.mulf %73, %74 : vector<1x32xf32>
    %76 = arith.mulf %70, %70 : vector<1x32xf32>
    %77 = arith.subf %75, %76 : vector<1x32xf32>
    %cst_36 = arith.constant 9.99999974E-6 : f32
    %78 = vector.broadcast %cst_36 : f32 to vector<1x32xf32>
    %79 = arith.addf %77, %78 : vector<1x32xf32>
    %80 = math.rsqrt %79 : vector<1x32xf32>
    %81 = arith.mulf %64, %80 : vector<1x32xf32>
    %82 = arith.mulf %70, %81 : vector<1x32xf32>
    %83 = arith.subf %65, %82 : vector<1x32xf32>
    %84 = vector.broadcast %81 : vector<1x32xf32> to vector<4x32xf32>
    %85 = arith.mulf %66, %84 : vector<4x32xf32>
    %86 = vector.broadcast %83 : vector<1x32xf32> to vector<4x32xf32>
    %87 = arith.addf %85, %86 : vector<4x32xf32>
    %cst_37 = arith.constant 0.000000e+00 : f32
    %88 = vector.broadcast %cst_37 : f32 to vector<4x32xf32>
    %89 = arith.maximumf %87, %88 : vector<4x32xf32>
    %90 = vector.extract_strided_slice %63 {offsets = [4, 0], sizes = [4, 32], strides = [1, 1]} : vector<8x32xf32> to vector<4x32xf32>
    %cst_38 = arith.constant dense<0.000000e+00> : vector<32xf32>
    %91 = vector.multi_reduction <add>, %90, %cst_38 [0] : vector<4x32xf32> to vector<32xf32>
    %92 = vector.shape_cast %91 : vector<32xf32> to vector<1x32xf32>
    %cst_39 = arith.constant 2.500000e-01 : f32
    %93 = vector.broadcast %cst_39 : f32 to vector<1x32xf32>
    %94 = arith.mulf %92, %93 : vector<1x32xf32>
    %95 = arith.mulf %90, %90 : vector<4x32xf32>
    %cst_40 = arith.constant dense<0.000000e+00> : vector<32xf32>
    %96 = vector.multi_reduction <add>, %95, %cst_40 [0] : vector<4x32xf32> to vector<32xf32>
    %97 = vector.shape_cast %96 : vector<32xf32> to vector<1x32xf32>
    %cst_41 = arith.constant 2.500000e-01 : f32
    %98 = vector.broadcast %cst_41 : f32 to vector<1x32xf32>
    %99 = arith.mulf %97, %98 : vector<1x32xf32>
    %100 = arith.mulf %94, %94 : vector<1x32xf32>
    %101 = arith.subf %99, %100 : vector<1x32xf32>
    %cst_42 = arith.constant 9.99999974E-6 : f32
    %102 = vector.broadcast %cst_42 : f32 to vector<1x32xf32>
    %103 = arith.addf %101, %102 : vector<1x32xf32>
    %104 = math.rsqrt %103 : vector<1x32xf32>
    %105 = arith.mulf %64, %104 : vector<1x32xf32>
    %106 = arith.mulf %94, %105 : vector<1x32xf32>
    %107 = arith.subf %65, %106 : vector<1x32xf32>
    %108 = vector.broadcast %105 : vector<1x32xf32> to vector<4x32xf32>
    %109 = arith.mulf %90, %108 : vector<4x32xf32>
    %110 = vector.broadcast %107 : vector<1x32xf32> to vector<4x32xf32>
    %111 = arith.addf %109, %110 : vector<4x32xf32>
    %cst_43 = arith.constant 0.000000e+00 : f32
    %112 = vector.broadcast %cst_43 : f32 to vector<4x32xf32>
    %113 = arith.maximumf %111, %112 : vector<4x32xf32>
    %114 = tpu.concatenate %89, %113 in 0 : vector<4x32xf32>, vector<4x32xf32> -> vector<8x32xf32>
    %c0_44 = arith.constant 0 : index
    %c0_45 = arith.constant 0 : index
    %115 = vector.load %arg10[%c0_44, %c0_45] : memref<32x16xf32, #tpu.memory_space<vmem>>, vector<32x16xf32>
    %cst_46 = arith.constant dense<0.000000e+00> : vector<8x16xf32>
    %116 = tpu.matmul %114, %115, %cst_46 {dimension_numbers = #tpu.dot_dimension_numbers<[1], [0], [0], [1], [0, 0, 1, 1], [], []>} : vector<8x32xf32>, vector<32x16xf32>, vector<8x16xf32> -> vector<8x16xf32>
    %c0_47 = arith.constant 0 : index
    %c0_48 = arith.constant 0 : index
    %117 = vector.load %arg11[%c0_47, %c0_48] : memref<1x16xf32, #tpu.memory_space<vmem>>, vector<1x16xf32>
    %118 = vector.broadcast %117 : vector<1x16xf32> to vector<8x16xf32>
    %119 = arith.addf %116, %118 : vector<8x16xf32>
    %120 = arith.negf %119 : vector<8x16xf32>
    %121 = math.exp %120 : vector<8x16xf32>
    %cst_49 = arith.constant 1.000000e+00 : f32
    %122 = vector.broadcast %cst_49 : f32 to vector<8x16xf32>
    %123 = arith.addf %122, %121 : vector<8x16xf32>
    %124 = arith.divf %122, %123 : vector<8x16xf32>
    %125 = vector.extract_strided_slice %124 {offsets = [0, 0], sizes = [4, 16], strides = [1, 1]} : vector<8x16xf32> to vector<4x16xf32>
    %126 = vector.extract_strided_slice %124 {offsets = [4, 0], sizes = [4, 16], strides = [1, 1]} : vector<8x16xf32> to vector<4x16xf32>
    %127 = arith.subf %125, %126 : vector<4x16xf32>
    %128 = math.absf %127 : vector<4x16xf32>
    %cst_50 = arith.constant dense<0.000000e+00> : vector<16xf32>
    %129 = vector.multi_reduction <add>, %128, %cst_50 [0] : vector<4x16xf32> to vector<16xf32>
    %130 = vector.shape_cast %129 : vector<16xf32> to vector<1x16xf32>
    %c0_51 = arith.constant 0 : index
    %c0_52 = arith.constant 0 : index
    %131 = vector.load %arg12[%c0_51, %c0_52] : memref<1x16xf32, #tpu.memory_space<vmem>>, vector<1x16xf32>
    %132 = arith.mulf %130, %131 : vector<1x16xf32>
    %cst_53 = arith.constant dense<0.000000e+00> : vector<1xf32>
    %133 = vector.multi_reduction <add>, %132, %cst_53 [1] : vector<1x16xf32> to vector<1xf32>
    %134 = vector.shape_cast %133 : vector<1xf32> to vector<1x1xf32>
    %c0_54 = arith.constant 0 : index
    %c0_55 = arith.constant 0 : index
    %135 = vector.load %arg13[%c0_54, %c0_55] : memref<1x1xf32, #tpu.memory_space<vmem>>, vector<1x1xf32>
    %cst_56 = arith.constant 4.000000e+00 : f32
    %136 = vector.broadcast %cst_56 : f32 to vector<1x1xf32>
    %137 = arith.mulf %136, %135 : vector<1x1xf32>
    %138 = arith.addf %134, %137 : vector<1x1xf32>
    %c0_57 = arith.constant 0 : index
    %c0_58 = arith.constant 0 : index
    %139 = vector.load %arg14[%c0_57, %c0_58] : memref<1x1xf32, #tpu.memory_space<vmem>>, vector<1x1xf32>
    tpu.vector_store %arg14[%c0_57, %c0_58], %138 {strides = array<i32>} : memref<1x1xf32, #tpu.memory_space<vmem>>, vector<1x1xf32>,
    return
  }
}

</mosaic_0001>

<llo_original>
// kernel: tpu_custom_call.1
$region0: #{tpu_custom_call.1}
  #allocation0 [shape = 'u32[]', space=smem, size = 0x4, offset = 0x4, fixed_abs, tag = 'smem constant byte address 0x4 - core index']
  #allocation1 [shape = 'u32[72,128]{1,0:T(1,128)}', space=vmem, size = 0x9000, scoped, tag = 'internal scratch']
  #allocation2 [shape = 'f32[1,1]{1,0:T(1,128)S(1)}', space=vmem, size = 0x200, scoped, tag = 'scoped memory for tpu_custom_call.1']
  %s0 = inlined_call_operand.vmem [shape: f32[4,8], index: 0, kind: input, shape index: {}]
  %s1 = inlined_call_operand.vmem [shape: f32[4,8], index: 1, kind: input, shape index: {}]
  %s2 = inlined_call_operand.vmem [shape: f32[8,64], index: 2, kind: input, shape index: {}]
  %s3 = inlined_call_operand.vmem [shape: f32[1,64], index: 3, kind: input, shape index: {}]
  %s4 = inlined_call_operand.vmem [shape: f32[1,64], index: 4, kind: input, shape index: {}]
  %s5 = inlined_call_operand.vmem [shape: f32[1,64], index: 5, kind: input, shape index: {}]
  %s6 = inlined_call_operand.vmem [shape: f32[64,32], index: 6, kind: input, shape index: {}]
  %s7 = inlined_call_operand.vmem [shape: f32[1,32], index: 7, kind: input, shape index: {}]
  %s8 = inlined_call_operand.vmem [shape: f32[1,32], index: 8, kind: input, shape index: {}]
  %s9 = inlined_call_operand.vmem [shape: f32[1,32], index: 9, kind: input, shape index: {}]
  %s10 = inlined_call_operand.vmem [shape: f32[32,16], index: 10, kind: input, shape index: {}]
  %s11 = inlined_call_operand.vmem [shape: f32[1,16], index: 11, kind: input, shape index: {}]
  %s12 = inlined_call_operand.vmem [shape: f32[1,16], index: 12, kind: input, shape index: {}]
  %s13 = inlined_call_operand.<no memory space> [shape: f32[1,1], index: 13, kind: input, shape index: {}]
  %s14 = inlined_call_operand.hbm [shape: f32[1,1], index: 14, kind: output, shape index: {}]
  %s15 = sld [smem:[#allocation0]]
  $region66: #{tpu_custom_call.1} parent=0
    _
  %s17 = ssub.s32 1, %s15
  %s18 = scalar_select 0, %s17, %s15
  %v19 = vstv %s13
  %20 = vst [vmem:[#allocation2] sm:$0x1] %v19
  $region1: #{tpu_custom_call.1} parent=0
    #allocation3 [shape = 'u8[512]{0}', space=vmem, size = 0x400, scoped, tag = 'output window, operand 0, single buffered']
    #allocation4 [shape = 's32[1]{0}', space=sflag, size = 0x4, scoped, tag = 'scoped memory for tpu_custom_call.1']
    %21 = vsyncpa [#allocation4], 0
    // Predicated region
    $region2: #{tpu_custom_call.1} parent=1 // pred_check
      _
    $region3: #{tpu_custom_call.1} parent=1 // pred_check_branch
      %23 = sbr.rel (0) target = $region5
    $region4: #{tpu_custom_call.1} parent=1 // pred_region
      _
    $region5: #{tpu_custom_call.1} parent=1 // pred_fallthru
      _
    // Predicated region
    $region6: #{tpu_custom_call.1} parent=1 // pred_check
      _
    $region7: #{tpu_custom_call.1} parent=1 // pred_check_branch
      %25 = sbr.rel (0) target = $region9
    $region8: #{tpu_custom_call.1} parent=1 // pred_region
      _
    $region9: #{tpu_custom_call.1} parent=1 // pred_fallthru
      _
    // Predicated region
    $region10: #{tpu_custom_call.1} parent=1 // pred_check
      _
    $region11: #{tpu_custom_call.1} parent=1 // pred_check_branch
      %27 = sbr.rel (0) target = $region13
    $region12: #{tpu_custom_call.1} parent=1 // pred_region
      _
    $region13: #{tpu_custom_call.1} parent=1 // pred_fallthru
      _
    // Predicated region
    $region14: #{tpu_custom_call.1} parent=1 // pred_check
      _
    $region15: #{tpu_custom_call.1} parent=1 // pred_check_branch
      %29 = sbr.rel (0) target = $region17
    $region16: #{tpu_custom_call.1} parent=1 // pred_region
      _
    $region17: #{tpu_custom_call.1} parent=1 // pred_fallthru
      _
    // Predicated region
    $region18: #{tpu_custom_call.1} parent=1 // pred_check
      _
    $region19: #{tpu_custom_call.1} parent=1 // pred_check_branch
      %31 = sbr.rel (0) target = $region21
    $region20: #{tpu_custom_call.1} parent=1 // pred_region
      _
    $region21: #{tpu_custom_call.1} parent=1 // pred_fallthru
      _
    // Predicated region
    $region22: #{tpu_custom_call.1} parent=1 // pred_check
      _
    $region23: #{tpu_custom_call.1} parent=1 // pred_check_branch
      %33 = sbr.rel (0) target = $region25
    $region24: #{tpu_custom_call.1} parent=1 // pred_region
      _
    $region25: #{tpu_custom_call.1} parent=1 // pred_fallthru
      _
    // Predicated region
    $region26: #{tpu_custom_call.1} parent=1 // pred_check
      _
    $region27: #{tpu_custom_call.1} parent=1 // pred_check_branch
      %35 = sbr.rel (0) target = $region29
    $region28: #{tpu_custom_call.1} parent=1 // pred_region
      _
    $region29: #{tpu_custom_call.1} parent=1 // pred_fallthru
      _
    // Predicated region
    $region30: #{tpu_custom_call.1} parent=1 // pred_check
      _
    $region31: #{tpu_custom_call.1} parent=1 // pred_check_branch
      %37 = sbr.rel (0) target = $region33
    $region32: #{tpu_custom_call.1} parent=1 // pred_region
      _
    $region33: #{tpu_custom_call.1} parent=1 // pred_fallthru
      _
    // Predicated region
    $region34: #{tpu_custom_call.1} parent=1 // pred_check
      _
    $region35: #{tpu_custom_call.1} parent=1 // pred_check_branch
      %39 = sbr.rel (0) target = $region37
    $region36: #{tpu_custom_call.1} parent=1 // pred_region
      _
    $region37: #{tpu_custom_call.1} parent=1 // pred_fallthru
      _
    // Predicated region
    $region38: #{tpu_custom_call.1} parent=1 // pred_check
      _
    $region39: #{tpu_custom_call.1} parent=1 // pred_check_branch
      %41 = sbr.rel (0) target = $region41
    $region40: #{tpu_custom_call.1} parent=1 // pred_region
      _
    $region41: #{tpu_custom_call.1} parent=1 // pred_fallthru
      _
    // Predicated region
    $region42: #{tpu_custom_call.1} parent=1 // pred_check
      _
    $region43: #{tpu_custom_call.1} parent=1 // pred_check_branch
      %43 = sbr.rel (0) target = $region45
    $region44: #{tpu_custom_call.1} parent=1 // pred_region
      _
    $region45: #{tpu_custom_call.1} parent=1 // pred_fallthru
      _
    // Predicated region
    $region46: #{tpu_custom_call.1} parent=1 // pred_check
      _
    $region47: #{tpu_custom_call.1} parent=1 // pred_check_branch
      %45 = sbr.rel (0) target = $region49
    $region48: #{tpu_custom_call.1} parent=1 // pred_region
      _
    $region49: #{tpu_custom_call.1} parent=1 // pred_fallthru
      _
    // Predicated region
    $region50: #{tpu_custom_call.1} parent=1 // pred_check
      _
    $region51: #{tpu_custom_call.1} parent=1 // pred_check_branch
      %47 = sbr.rel (0) target = $region53
    $region52: #{tpu_custom_call.1} parent=1 // pred_region
      _
    $region53: #{tpu_custom_call.1} parent=1 // pred_fallthru
      _
    // Predicated region
    $region54: #{tpu_custom_call.1} parent=1 // pred_check
      _
    $region55: #{tpu_custom_call.1} parent=1 // pred_check_branch
      %49 = sbr.rel (0) target = $region57
    $region56: #{tpu_custom_call.1} parent=1 // pred_region
      _
    $region57: #{tpu_custom_call.1} parent=1 // pred_fallthru
      _
    %v50 = vld [vmem:[%s0] sm:$0xf]
    %v51 = vld [vmem:[%s1] sm:$0xf]
    %v53 = vrot.slane %v51, 4
    %vm55 = vcmask 1043456
    %v56 = vsel %vm55, %v50, %v53
    %v57 = vld [vmem:[%s2] sm:$0xff]
    %v58 = vld [vmem:[%s3] sm:$0x1]
    %v60 = vperm.slane %v58, 0
    %vm62 = vcmask 64512
    %v64 = vsel %vm62, %v56, 0
    %66 = vmatpush.msra.mxu0 0.0
    %67 = vmatpush.msra.mxu0 0.0
    %68 = vmatpush.msra.mxu0 0.0
    %69 = vmatpush.msra.mxu0 0.0
    %70 = vmatpush.msra.mxu0 0.0
    %71 = vmatpush.msra.mxu0 0.0
    %72 = vmatpush.msra.mxu0 0.0
    %73 = vmatpush.msra.mxu0 0.0
    %74 = vmatpush.msra.mxu0 0.0
    %75 = vmatpush.msra.mxu0 0.0
    %76 = vmatpush.msra.mxu0 0.0
    %77 = vmatpush.msra.mxu0 0.0
    %78 = vmatpush.msra.mxu0 0.0
    %79 = vmatpush.msra.mxu0 0.0
    %80 = vmatpush.msra.mxu0 0.0
    %81 = vmatpush.msra.mxu0 %v57
    %82 = vmatmul.f32.gmra.mxu0 %v64
    %v83 = vpop.f32.mrf.mxu0
    %v84 = vadd.f32 %v60, %v83
    %85 = vdwg.mxu0
    %v86 = vld [vmem:[%s4] sm:$0x1]
    %v87 = vld [vmem:[%s5] sm:$0x1]
    %vm88 = vcmask 519168
    %v89 = vsel %vm88, %v84, 0.0
    %v90 = vrot.slane %v89, 4
    %v91 = vadd.f32 %v89, %v90
    %v92 = vrot.slane %v91, 2
    %v93 = vadd.f32 %v91, %v92
    %v94 = vrot.slane %v93, 1
    %v95 = vadd.f32 %v93, %v94
    %v96 = vmul.f32 %v95, 0.25
    %v97 = vmul.f32 %v84, %v84
    %v98 = vsel %vm88, %v97, 0.0
    %v99 = vrot.slane %v98, 4
    %v100 = vadd.f32 %v98, %v99
    %v101 = vrot.slane %v100, 2
    %v102 = vadd.f32 %v100, %v101
    %v103 = vrot.slane %v102, 1
    %v104 = vadd.f32 %v102, %v103
    %v105 = vmul.f32 %v104, 0.25
    %v106 = vmul.f32 %v96, %v96
    %v107 = vsub.f32 %v105, %v106
    %v108 = vadd.f32 %v107, 1e-05
    %v109 = vrsqrt.pop %v108
    %v110 = vmul.f32 %v109, %v108
    %v111 = vmul.f32 %v110, %v109
    %v112 = vmul.f32 0.5, %v111
    %v113 = vsub.f32 1.5, %v112
    %v114 = vmul.f32 %v109, %v113
    %vm115 = vweird.f32 %v108
    %vm116 = vweird.f32 %v109
    %vm117 = vmor %vm115, %vm116
    %v118 = vsel %vm117, %v109, %v114
    %v119 = vmul.f32 %v86, %v118
    %v120 = vmul.f32 %v96, %v119
    %v121 = vsub.f32 %v87, %v120
    %v123 = vperm.slane %v119, 0
    %v125 = vmul.f32 %v84, %v123
    %v127 = vperm.slane %v121, 0
    %v129 = vadd.f32 %v125, %v127
    %v130 = vmax.f32 %v129, 0.0
    %v132 = vrot.slane %v84, 4
    %v134 = vsel %vm88, %v132, 0.0
    %v135 = vrot.slane %v134, 4
    %v136 = vadd.f32 %v134, %v135
    %v137 = vrot.slane %v136, 2
    %v138 = vadd.f32 %v136, %v137
    %v139 = vrot.slane %v138, 1
    %v140 = vadd.f32 %v138, %v139
    %v141 = vmul.f32 %v140, 0.25
    %v143 = vrot.slane %v97, 4
    %v145 = vsel %vm88, %v143, 0.0
    %v146 = vrot.slane %v145, 4
    %v147 = vadd.f32 %v145, %v146
    %v148 = vrot.slane %v147, 2
    %v149 = vadd.f32 %v147, %v148
    %v150 = vrot.slane %v149, 1
    %v151 = vadd.f32 %v149, %v150
    %v152 = vmul.f32 %v151, 0.25
    %v153 = vmul.f32 %v141, %v141
    %v154 = vsub.f32 %v152, %v153
    %v155 = vadd.f32 %v154, 1e-05
    %v156 = vrsqrt.pop %v155
    %v157 = vmul.f32 %v156, %v155
    %v158 = vmul.f32 %v157, %v156
    %v159 = vmul.f32 0.5, %v158
    %v160 = vsub.f32 1.5, %v159
    %v161 = vmul.f32 %v156, %v160
    %vm162 = vweird.f32 %v155
    %vm163 = vweird.f32 %v156
    %vm164 = vmor %vm162, %vm163
    %v165 = vsel %vm164, %v156, %v161
    %v166 = vmul.f32 %v86, %v165
    %v167 = vmul.f32 %v141, %v166
    %v168 = vsub.f32 %v87, %v167
    %v170 = vperm.slane %v166, 0
    %v172 = vmul.f32 %v84, %v170
    %v174 = vperm.slane %v168, 0
    %v176 = vadd.f32 %v172, %v174
    %v177 = vmax.f32 %v176, 0.0
    %v178 = vsel %vm55, %v130, %v177
    %v179 = vld [vmem:[%s6] sm:$0xff]
    %v180 = vld [vmem:[%s6 + $0x8] sm:$0xff]
    %v181 = vld [vmem:[%s6 + $0x10] sm:$0xff]
    %v182 = vld [vmem:[%s6 + $0x18] sm:$0xff]
    %v183 = vld [vmem:[%s6 + $0x20] sm:$0xff]
    %v184 = vld [vmem:[%s6 + $0x28] sm:$0xff]
    %v185 = vld [vmem:[%s6 + $0x30] sm:$0xff]
    %v186 = vld [vmem:[%s6 + $0x38] sm:$0xff]
    %v187 = vld [vmem:[%s7] sm:$0x1]
    %v189 = vperm.slane %v187, 0
    %vm191 = vcmask 523264
    %v193 = vsel %vm191, %v178, 0
    %195 = vmatpush.msra.mxu0 0.0
    %196 = vmatpush.msra.mxu0 0.0
    %197 = vmatpush.msra.mxu0 0.0
    %198 = vmatpush.msra.mxu0 0.0
    %199 = vmatpush.msra.mxu0 0.0
    %200 = vmatpush.msra.mxu0 0.0
    %201 = vmatpush.msra.mxu0 0.0
    %202 = vmatpush.msra.mxu0 0.0
    %203 = vmatpush.msra.mxu0 %v186
    %204 = vmatpush.msra.mxu0 %v185
    %205 = vmatpush.msra.mxu0 %v184
    %206 = vmatpush.msra.mxu0 %v183
    %207 = vmatpush.msra.mxu0 %v182
    %208 = vmatpush.msra.mxu0 %v181
    %209 = vmatpush.msra.mxu0 %v180
    %210 = vmatpush.msra.mxu0 %v179
    %211 = vmatmul.f32.gmra.mxu0 %v193
    %v212 = vpop.f32.mrf.mxu0
    %v213 = vadd.f32 %v189, %v212
    %214 = vdwg.mxu0
    %v215 = vld [vmem:[%s8] sm:$0x1]
    %v216 = vld [vmem:[%s9] sm:$0x1]
    %vm217 = vcmask 257024
    %v218 = vsel %vm217, %v213, 0.0
    %v219 = vrot.slane %v218, 4
    %v220 = vadd.f32 %v218, %v219
    %v221 = vrot.slane %v220, 2
    %v222 = vadd.f32 %v220, %v221
    %v223 = vrot.slane %v222, 1
    %v224 = vadd.f32 %v222, %v223
    %v225 = vmul.f32 %v224, 0.25
    %v226 = vmul.f32 %v213, %v213
    %v227 = vsel %vm217, %v226, 0.0
    %v228 = vrot.slane %v227, 4
    %v229 = vadd.f32 %v227, %v228
    %v230 = vrot.slane %v229, 2
    %v231 = vadd.f32 %v229, %v230
    %v232 = vrot.slane %v231, 1
    %v233 = vadd.f32 %v231, %v232
    %v234 = vmul.f32 %v233, 0.25
    %v235 = vmul.f32 %v225, %v225
    %v236 = vsub.f32 %v234, %v235
    %v237 = vadd.f32 %v236, 1e-05
    %v238 = vrsqrt.pop %v237
    %v239 = vmul.f32 %v238, %v237
    %v240 = vmul.f32 %v239, %v238
    %v241 = vmul.f32 0.5, %v240
    %v242 = vsub.f32 1.5, %v241
    %v243 = vmul.f32 %v238, %v242
    %vm244 = vweird.f32 %v237
    %vm245 = vweird.f32 %v238
    %vm246 = vmor %vm244, %vm245
    %v247 = vsel %vm246, %v238, %v243
    %v248 = vmul.f32 %v215, %v247
    %v249 = vmul.f32 %v225, %v248
    %v250 = vsub.f32 %v216, %v249
    %v252 = vperm.slane %v248, 0
    %v254 = vmul.f32 %v213, %v252
    %v256 = vperm.slane %v250, 0
    %v258 = vadd.f32 %v254, %v256
    %v259 = vmax.f32 %v258, 0.0
    %v261 = vrot.slane %v213, 4
    %v263 = vsel %vm217, %v261, 0.0
    %v264 = vrot.slane %v263, 4
    %v265 = vadd.f32 %v263, %v264
    %v266 = vrot.slane %v265, 2
    %v267 = vadd.f32 %v265, %v266
    %v268 = vrot.slane %v267, 1
    %v269 = vadd.f32 %v267, %v268
    %v270 = vmul.f32 %v269, 0.25
    %v272 = vrot.slane %v226, 4
    %v274 = vsel %vm217, %v272, 0.0
    %v275 = vrot.slane %v274, 4
    %v276 = vadd.f32 %v274, %v275
    %v277 = vrot.slane %v276, 2
    %v278 = vadd.f32 %v276, %v277
    %v279 = vrot.slane %v278, 1
    %v280 = vadd.f32 %v278, %v279
    %v281 = vmul.f32 %v280, 0.25
    %v282 = vmul.f32 %v270, %v270
    %v283 = vsub.f32 %v281, %v282
    %v284 = vadd.f32 %v283, 1e-05
    %v285 = vrsqrt.pop %v284
    %v286 = vmul.f32 %v285, %v284
    %v287 = vmul.f32 %v286, %v285
    %v288 = vmul.f32 0.5, %v287
    %v289 = vsub.f32 1.5, %v288
    %v290 = vmul.f32 %v285, %v289
    %vm291 = vweird.f32 %v284
    %vm292 = vweird.f32 %v285
    %vm293 = vmor %vm291, %vm292
    %v294 = vsel %vm293, %v285, %v290
    %v295 = vmul.f32 %v215, %v294
    %v296 = vmul.f32 %v270, %v295
    %v297 = vsub.f32 %v216, %v296
    %v299 = vperm.slane %v295, 0
    %v301 = vmul.f32 %v213, %v299
    %v303 = vperm.slane %v297, 0
    %v305 = vadd.f32 %v301, %v303
    %v306 = vmax.f32 %v305, 0.0
    %v307 = vsel %vm55, %v259, %v306
    %v308 = vld [vmem:[%s10] sm:$0xff]
    %v309 = vld [vmem:[%s10 + $0x8] sm:$0xff]
    %v310 = vld [vmem:[%s10 + $0x10] sm:$0xff]
    %v311 = vld [vmem:[%s10 + $0x18] sm:$0xff]
    %v312 = vld [vmem:[%s11] sm:$0x1]
    %v314 = vperm.slane %v312, 0
    %vm316 = vcmask 261120
    %v318 = vsel %vm316, %v307, 0
    %320 = vmatpush.msra.mxu0 0.0
    %321 = vmatpush.msra.mxu0 0.0
    %322 = vmatpush.msra.mxu0 0.0
    %323 = vmatpush.msra.mxu0 0.0
    %324 = vmatpush.msra.mxu0 0.0
    %325 = vmatpush.msra.mxu0 0.0
    %326 = vmatpush.msra.mxu0 0.0
    %327 = vmatpush.msra.mxu0 0.0
    %328 = vmatpush.msra.mxu0 0.0
    %329 = vmatpush.msra.mxu0 0.0
    %330 = vmatpush.msra.mxu0 0.0
    %331 = vmatpush.msra.mxu0 0.0
    %332 = vmatpush.msra.mxu0 %v311
    %333 = vmatpush.msra.mxu0 %v310
    %334 = vmatpush.msra.mxu0 %v309
    %335 = vmatpush.msra.mxu0 %v308
    %336 = vmatmul.f32.gmra.mxu0 %v318
    %v337 = vpop.f32.mrf.mxu0
    %v338 = vadd.f32 %v314, %v337
    %339 = vdwg.mxu0
    %v340 = vxor.u32 %v338, 2147483648
    %v341 = vmul.f32 %v340, 1.442695
    %v342 = vpow.pop %v341
    %v343 = vadd.f32 %v342, 1.0
    %v344 = vrcp.pop %v343
    %v345 = vmul.f32 %v343, %v344
    %v346 = vsub.f32 1.0, %v345
    %v347 = vmul.f32 %v344, %v346
    %v348 = vadd.f32 %v344, %v347
    %vm349 = vweird.f32 %v343
    %vm350 = vweird.f32 %v344
    %vm351 = vmor %vm349, %vm350
    %v352 = vsel %vm351, %v344, %v348
    %v353 = vand.u32 2147483647, %v343
    %vm354 = vcmp.eq.f32.partialorder %v353, 8.507059e+37
    %v355 = vand.u32 %v343, 2147483648
    %v356 = vor.u32 1.1754944e-38, %v355
    %v357 = vsel %vm354, %v356, %v352
    %v358 = vmul.f32 1.0, %v357
    %v360 = vrot.slane %v358, 4
    %v362 = vsub.f32 %v358, %v360
    %v363 = vand.u32 2147483647, %v362
    %vm364 = vcmask 125952
    %v365 = vsel %vm364, %v363, 0.0
    %v366 = vrot.slane %v365, 4
    %v367 = vadd.f32 %v365, %v366
    %v368 = vrot.slane %v367, 2
    %v369 = vadd.f32 %v367, %v368
    %v370 = vrot.slane %v369, 1
    %v371 = vadd.f32 %v369, %v370
    %v372 = vld [vmem:[%s12] sm:$0x1]
    %v373 = vmul.f32 %v371, %v372
    %vm374 = vcmask 122880
    %v375 = vsel %vm374, %v373, 0.0
    %376 = vadd.xlane.f32.xlu0 %v375
    %v377 = vpop.xlane.xlu0 %376
    %v378 = vld [vmem:[#allocation2] sm:$0x1]
    %v379 = vmul.f32 %v378, 4.0
    %v380 = vadd.f32 %v377, %v379
    %vm381 = vcmask 0
    %382 = vst.msk [vmem:[#allocation3] sm:$0x1] %vm381, %v380
    // Predicated region
    $region58: #{tpu_custom_call.1} parent=1 // pred_check
      _
    $region59: #{tpu_custom_call.1} parent=1 // pred_check_branch
      %384 = sbr.rel (0) target = $region61
    $region60: #{tpu_custom_call.1} parent=1 // pred_region
      %386 = vsyncadd [#allocation4], 0
      %s388 = sshll.u32 [#allocation3], 4
      %s389 = int_to_ptr.vmem [resolvable:$true] %s388
      %s390 = sshll.u32 %s14, 4
      %s391 = int_to_ptr.hbm [resolvable:$true] %s390
      %393 = dma.vmem_to_hbm [thread:$0]  %s389, 16, %s391, [#allocation4]
    $region61: #{tpu_custom_call.1} parent=1 // pred_fallthru
      _
    // Predicated region
    $region62: #{tpu_custom_call.1} parent=1 // pred_check
      _
    $region63: #{tpu_custom_call.1} parent=1 // pred_check_branch
      %395 = sbr.rel (0) target = $region65
    $region64: #{tpu_custom_call.1} parent=1 // pred_region
      %397 = dma.done [#allocation4], 16
    $region65: #{tpu_custom_call.1} parent=1 // pred_fallthru
      _
    %398 = vsyncpa [#allocation4], 1

</llo_original>
